<compile_context>
chip_gen: v7x
topology: tpu7x:2x2x1
jax: 0.10.0
libtpu: 0.0.40
codegen_flags: <defaults>
</compile_context>

<pallas_src>
import functools

import jax
import jax.numpy as jnp
from jax.experimental import pallas as pl
from jax.experimental.pallas import tpu as pltpu


def _dsconv_kernel(x_ref, mask_ref, wdw_ref, a1_ref, c1_ref, wp_ref, c2_ref,
                   wm_ref, bm_ref, out_ref, *, shifts):
    """One image per grid step.  All operands are small, lane-dense 2-D tiles."""
    x = x_ref[0]                                       # (Cin, HW) - a couple of vregs

    # ---- depthwise conv (groups == Cin), stride 1, dilation folded into shifts ----
    # Each tap is a circular lane roll of the flat image; positions whose source
    # pixel falls outside the image (left/right/top/bottom borders) are zeroed
    # by the precomputed per-tap mask, so no padded copy of the input is needed.
    acc = jnp.zeros_like(x)
    for t, shift in enumerate(shifts):                 # K*K static taps -> unrolled
        xs = pltpu.roll(x, shift=shift, axis=1) if shift else x
        acc = acc + (xs * mask_ref[t:t + 1, :]) * wdw_ref[:, t:t + 1]

    # ---- BatchNorm1 (folded to per-channel scale/bias, dw-bias included) + ReLU ----
    y1 = jnp.maximum(acc * a1_ref[...] + c1_ref[...], 0.0)          # (Cin, HW)

    # ---- pointwise 1x1 conv (BN2 scale folded into weights) + bias + ReLU ----
    y2 = jnp.dot(wp_ref[...], y1, preferred_element_type=jnp.float32)  # (Cout, HW)
    y2 = jnp.maximum(y2 + c2_ref[...], 0.0)

    # ---- residual mapping: 1x1 conv on the original input ----
    m = jnp.dot(wm_ref[...], x, preferred_element_type=jnp.float32) + bm_ref[...]

    out_ref[0] = jnp.maximum(y2 + m, 0.0).astype(out_ref.dtype)      # (Cout, HW) dense store


def depthwise_separable_conv2d(x_nchw, params, *, kernel_size, padding,
                               dilation_rate, stride=1, eps=1e-5):
    assert stride == 1, "residual add in forward() requires stride == 1"
    N, Cin, H, W = x_nchw.shape
    K, dil, P = kernel_size, dilation_rate, padding
    # the residual add only shape-matches the depthwise branch under 'same' padding
    assert 2 * P == (K - 1) * dil, "requires 'same' padding: 2*padding == (K-1)*dilation"
    HW = H * W

    # NCHW -> (N, Cin, H*W): free reshape, channel-major, spatial on lanes.
    x = x_nchw.reshape(N, Cin, HW).astype(jnp.float32)

    # Fold BatchNorm (eval-mode / running-stats semantics) into scale & bias.
    # TODO(synk): training-mode BN (per-batch statistics) is not reproduced here.
    s1 = params["bn1_gamma"] / jnp.sqrt(params["bn1_var"] + eps)
    t1 = params["bn1_beta"] - params["bn1_mean"] * s1
    s2 = params["bn2_gamma"] / jnp.sqrt(params["bn2_var"] + eps)
    t2 = params["bn2_beta"] - params["bn2_mean"] * s2

    wdw = params["w_dw"][:, 0].reshape(Cin, K * K)                    # (Cin, K*K)
    a1 = s1.reshape(Cin, 1)                                           # BN1 scale
    c1 = (params["b_dw"] * s1 + t1).reshape(Cin, 1)                   # dw-bias + BN1 bias

    wp = params["w_pw"][:, :, 0, 0] * s2[:, None]                     # (Cout, Cin), BN2 folded
    Cout = wp.shape[0]
    c2 = (params["b_pw"] * s2 + t2).reshape(Cout, 1)

    wm = params["w_map"][:, :, 0, 0]                                  # (Cout, Cin)
    bm = params["b_map"].reshape(Cout, 1)

    # Per-tap lane shifts (static) and validity masks (tiny (K*K, HW) array).
    hh = jnp.arange(H)[:, None]
    ww = jnp.arange(W)[None, :]
    shifts, masks = [], []
    for kh in range(K):
        for kw in range(K):
            off = (kh * dil - P) * W + (kw * dil - P)   # flat source offset of this tap
            shifts.append((-off) % HW)                  # roll moves elems toward higher idx
            hs = hh + kh * dil - P
            ws = ww + kw * dil - P
            valid = (hs >= 0) & (hs < H) & (ws >= 0) & (ws < W)
            masks.append(valid.astype(jnp.float32).reshape(HW))
    masks = jnp.stack(masks)                            # (K*K, HW)

    kernel = functools.partial(_dsconv_kernel, shifts=tuple(shifts))

    def const_spec(shape):
        return pl.BlockSpec(shape, lambda n: (0,) * len(shape))

    out = pl.pallas_call(
        kernel,
        out_shape=jax.ShapeDtypeStruct((N, Cout, HW), jnp.float32),
        grid=(N,),
        in_specs=[
            pl.BlockSpec((1, Cin, HW), lambda n: (n, 0, 0)),          # image n (channel-major)
            const_spec((K * K, HW)),                                  # tap validity masks
            const_spec((Cin, K * K)),                                 # depthwise weights
            const_spec((Cin, 1)), const_spec((Cin, 1)),               # BN1 scale / bias
            const_spec((Cout, Cin)), const_spec((Cout, 1)),           # pointwise W / bias
            const_spec((Cout, Cin)), const_spec((Cout, 1)),           # mapping  W / bias
        ],
        out_specs=pl.BlockSpec((1, Cout, HW), lambda n: (n, 0, 0)),
        compiler_params=pltpu.CompilerParams(dimension_semantics=("parallel",)),
    )(x, masks, wdw, a1, c1, wp, c2, wm, bm)

    # (N, Cout, H*W) -> NCHW: free reshape.
    return out.reshape(N, Cout, H, W)


def init_params(key, in_chans, out_chans, kernel_size):
    ks = jax.random.split(key, 14)
    f32 = jnp.float32
    return {
        # depthwise conv: PyTorch weight shape (in_chans, 1, K, K)
        "w_dw": 0.3 * jax.random.normal(ks[0], (in_chans, 1, kernel_size, kernel_size), f32),
        "b_dw": 0.1 * jax.random.normal(ks[1], (in_chans,), f32),
        "bn1_gamma": 1.0 + 0.1 * jax.random.normal(ks[2], (in_chans,), f32),
        "bn1_beta": 0.1 * jax.random.normal(ks[3], (in_chans,), f32),
        "bn1_mean": 0.05 * jax.random.normal(ks[4], (in_chans,), f32),
        "bn1_var": jnp.abs(1.0 + 0.1 * jax.random.normal(ks[5], (in_chans,), f32)),
        # pointwise conv: (out_chans, in_chans, 1, 1)
        "w_pw": 0.3 * jax.random.normal(ks[6], (out_chans, in_chans, 1, 1), f32),
        "b_pw": 0.1 * jax.random.normal(ks[7], (out_chans,), f32),
        "bn2_gamma": 1.0 + 0.1 * jax.random.normal(ks[8], (out_chans,), f32),
        "bn2_beta": 0.1 * jax.random.normal(ks[9], (out_chans,), f32),
        "bn2_mean": 0.05 * jax.random.normal(ks[10], (out_chans,), f32),
        "bn2_var": jnp.abs(1.0 + 0.1 * jax.random.normal(ks[11], (out_chans,), f32)),
        # residual mapping 1x1 conv: (out_chans, in_chans, 1, 1)
        "w_map": 0.3 * jax.random.normal(ks[12], (out_chans, in_chans, 1, 1), f32),
        "b_map": 0.1 * jax.random.normal(ks[13], (out_chans,), f32),
    }


def reference(x, p, *, K, P, dil, eps=1e-5):
    """Pure-JAX NCHW reference mirroring the PyTorch forward (eval-mode BN)."""
    dn = ("NCHW", "OIHW", "NCHW")
    bc = lambda v: v[None, :, None, None]
    dw = jax.lax.conv_general_dilated(
        x, p["w_dw"], (1, 1), ((P, P), (P, P)), rhs_dilation=(dil, dil),
        feature_group_count=x.shape[1], dimension_numbers=dn) + bc(p["b_dw"])
    s1 = p["bn1_gamma"] / jnp.sqrt(p["bn1_var"] + eps)
    y1 = jax.nn.relu((dw - bc(p["bn1_mean"])) * bc(s1) + bc(p["bn1_beta"]))
    pw = jax.lax.conv_general_dilated(y1, p["w_pw"], (1, 1), "VALID",
                                      dimension_numbers=dn) + bc(p["b_pw"])
    s2 = p["bn2_gamma"] / jnp.sqrt(p["bn2_var"] + eps)
    fx = jax.nn.relu((pw - bc(p["bn2_mean"])) * bc(s2) + bc(p["bn2_beta"]))
    mp = jax.lax.conv_general_dilated(x, p["w_map"], (1, 1), "VALID",
                                      dimension_numbers=dn) + bc(p["b_map"])
    return jax.nn.relu(fx + mp)


if __name__ == "__main__":
    key = jax.random.PRNGKey(0)
    k_x, k_p = jax.random.split(key)

    N, Cin, H, W = 2, 4, 16, 16
    Cout, K, P, dil = 8, 3, 1, 1

    x = jax.random.normal(k_x, (N, Cin, H, W), jnp.float32)
    params = init_params(k_p, Cin, Cout, K)

    out = depthwise_separable_conv2d(x, params, kernel_size=K, padding=P,
                                     dilation_rate=dil, stride=1)
    out = jax.block_until_ready(out)

    assert out.shape == (N, Cout, H, W), out.shape
    ref = reference(x, params, K=K, P=P, dil=dil)
    max_err = float(jnp.max(jnp.abs(out - ref)))
    assert max_err < 1e-4, f"max abs error {max_err}"

    print("KERNEL_OK")
</pallas_src>

<mosaic_0001>
module attributes {stable_mosaic.version = 11 : i64} {
  func.func @_dsconv_kernel(%arg0: i32, %arg1: memref<1x4x256xf32, #tpu.memory_space<vmem>>, %arg2: memref<9x256xf32, #tpu.memory_space<vmem>>, %arg3: memref<4x9xf32, #tpu.memory_space<vmem>>, %arg4: memref<4x1xf32, #tpu.memory_space<vmem>>, %arg5: memref<4x1xf32, #tpu.memory_space<vmem>>, %arg6: memref<8x4xf32, #tpu.memory_space<vmem>>, %arg7: memref<8x1xf32, #tpu.memory_space<vmem>>, %arg8: memref<8x4xf32, #tpu.memory_space<vmem>>, %arg9: memref<8x1xf32, #tpu.memory_space<vmem>>, %arg10: memref<1x8x256xf32, #tpu.memory_space<vmem>>) attributes {dimension_semantics = [#tpu.dimension_semantics<parallel>], iteration_bounds = array<i64: 2>, scalar_prefetch = 0 : i64, scratch_operands = 0 : i64, tpu.core_type = #tpu.core_type<tc>, window_params = [{transform_indices = @transform_0, window_bounds = array<i64: 1, 4, 256>}, {pipeline_mode = #tpu.pipeline_mode<synchronous>, transform_indices = @transform_1, window_bounds = array<i64: 9, 256>}, {pipeline_mode = #tpu.pipeline_mode<synchronous>, transform_indices = @transform_2, window_bounds = array<i64: 4, 9>}, {pipeline_mode = #tpu.pipeline_mode<synchronous>, transform_indices = @transform_3, window_bounds = array<i64: 4, 1>}, {pipeline_mode = #tpu.pipeline_mode<synchronous>, transform_indices = @transform_4, window_bounds = array<i64: 4, 1>}, {pipeline_mode = #tpu.pipeline_mode<synchronous>, transform_indices = @transform_5, window_bounds = array<i64: 8, 4>}, {pipeline_mode = #tpu.pipeline_mode<synchronous>, transform_indices = @transform_6, window_bounds = array<i64: 8, 1>}, {pipeline_mode = #tpu.pipeline_mode<synchronous>, transform_indices = @transform_7, window_bounds = array<i64: 8, 4>}, {pipeline_mode = #tpu.pipeline_mode<synchronous>, transform_indices = @transform_8, window_bounds = array<i64: 8, 1>}, {transform_indices = @transform_9, window_bounds = array<i64: 1, 8, 256>}]} {
    %c0 = arith.constant 0 : index
    %c0_0 = arith.constant 0 : index
    %c0_1 = arith.constant 0 : index
    %0 = vector.load %arg1[%c0, %c0_0, %c0_1] : memref<1x4x256xf32, #tpu.memory_space<vmem>>, vector<1x4x256xf32>
    %1 = vector.shape_cast %0 : vector<1x4x256xf32> to vector<4x256xf32>
    %cst = arith.constant 0.000000e+00 : f32
    %2 = vector.broadcast %cst : f32 to vector<4x256xf32>
    %c17_i32 = arith.constant 17 : i32
    %3 = tpu.dynamic_rotate %1 by %c17_i32 dim 1 : vector<4x256xf32>, i32 -> vector<4x256xf32>
    %c0_2 = arith.constant 0 : index
    %c0_3 = arith.constant 0 : index
    %4 = vector.load %arg2[%c0_2, %c0_3] : memref<9x256xf32, #tpu.memory_space<vmem>>, vector<1x256xf32>
    %5 = vector.broadcast %4 : vector<1x256xf32> to vector<4x256xf32>
    %6 = arith.mulf %3, %5 : vector<4x256xf32>
    %c0_4 = arith.constant 0 : index
    %c0_5 = arith.constant 0 : index
    %7 = vector.load %arg3[%c0_4, %c0_5] : memref<4x9xf32, #tpu.memory_space<vmem>>, vector<4x1xf32>
    %8 = vector.broadcast %7 : vector<4x1xf32> to vector<4x256xf32>
    %9 = arith.mulf %6, %8 : vector<4x256xf32>
    %10 = arith.addf %2, %9 : vector<4x256xf32>
    %c16_i32 = arith.constant 16 : i32
    %11 = tpu.dynamic_rotate %1 by %c16_i32 dim 1 : vector<4x256xf32>, i32 -> vector<4x256xf32>
    %c1 = arith.constant 1 : index
    %c0_6 = arith.constant 0 : index
    %12 = vector.load %arg2[%c1, %c0_6] : memref<9x256xf32, #tpu.memory_space<vmem>>, vector<1x256xf32>
    %13 = vector.broadcast %12 : vector<1x256xf32> to vector<4x256xf32>
    %14 = arith.mulf %11, %13 : vector<4x256xf32>
    %c0_7 = arith.constant 0 : index
    %c1_8 = arith.constant 1 : index
    %15 = vector.load %arg3[%c0_7, %c1_8] : memref<4x9xf32, #tpu.memory_space<vmem>>, vector<4x1xf32>
    %16 = vector.broadcast %15 : vector<4x1xf32> to vector<4x256xf32>
    %17 = arith.mulf %14, %16 : vector<4x256xf32>
    %18 = arith.addf %10, %17 : vector<4x256xf32>
    %c15_i32 = arith.constant 15 : i32
    %19 = tpu.dynamic_rotate %1 by %c15_i32 dim 1 : vector<4x256xf32>, i32 -> vector<4x256xf32>
    %c2 = arith.constant 2 : index
    %c0_9 = arith.constant 0 : index
    %20 = vector.load %arg2[%c2, %c0_9] : memref<9x256xf32, #tpu.memory_space<vmem>>, vector<1x256xf32>
    %21 = vector.broadcast %20 : vector<1x256xf32> to vector<4x256xf32>
    %22 = arith.mulf %19, %21 : vector<4x256xf32>
    %c0_10 = arith.constant 0 : index
    %c2_11 = arith.constant 2 : index
    %23 = vector.load %arg3[%c0_10, %c2_11] : memref<4x9xf32, #tpu.memory_space<vmem>>, vector<4x1xf32>
    %24 = vector.broadcast %23 : vector<4x1xf32> to vector<4x256xf32>
    %25 = arith.mulf %22, %24 : vector<4x256xf32>
    %26 = arith.addf %18, %25 : vector<4x256xf32>
    %c1_i32 = arith.constant 1 : i32
    %27 = tpu.dynamic_rotate %1 by %c1_i32 dim 1 : vector<4x256xf32>, i32 -> vector<4x256xf32>
    %c3 = arith.constant 3 : index
    %c0_12 = arith.constant 0 : index
    %28 = vector.load %arg2[%c3, %c0_12] : memref<9x256xf32, #tpu.memory_space<vmem>>, vector<1x256xf32>
    %29 = vector.broadcast %28 : vector<1x256xf32> to vector<4x256xf32>
    %30 = arith.mulf %27, %29 : vector<4x256xf32>
    %c0_13 = arith.constant 0 : index
    %c3_14 = arith.constant 3 : index
    %31 = vector.load %arg3[%c0_13, %c3_14] : memref<4x9xf32, #tpu.memory_space<vmem>>, vector<4x1xf32>
    %32 = vector.broadcast %31 : vector<4x1xf32> to vector<4x256xf32>
    %33 = arith.mulf %30, %32 : vector<4x256xf32>
    %34 = arith.addf %26, %33 : vector<4x256xf32>
    %c4 = arith.constant 4 : index
    %c0_15 = arith.constant 0 : index
    %35 = vector.load %arg2[%c4, %c0_15] : memref<9x256xf32, #tpu.memory_space<vmem>>, vector<1x256xf32>
    %36 = vector.broadcast %35 : vector<1x256xf32> to vector<4x256xf32>
    %37 = arith.mulf %1, %36 : vector<4x256xf32>
    %c0_16 = arith.constant 0 : index
    %c4_17 = arith.constant 4 : index
    %38 = vector.load %arg3[%c0_16, %c4_17] : memref<4x9xf32, #tpu.memory_space<vmem>>, vector<4x1xf32>
    %39 = vector.broadcast %38 : vector<4x1xf32> to vector<4x256xf32>
    %40 = arith.mulf %37, %39 : vector<4x256xf32>
    %41 = arith.addf %34, %40 : vector<4x256xf32>
    %c255_i32 = arith.constant 255 : i32
    %42 = tpu.dynamic_rotate %1 by %c255_i32 dim 1 : vector<4x256xf32>, i32 -> vector<4x256xf32>
    %c5 = arith.constant 5 : index
    %c0_18 = arith.constant 0 : index
    %43 = vector.load %arg2[%c5, %c0_18] : memref<9x256xf32, #tpu.memory_space<vmem>>, vector<1x256xf32>
    %44 = vector.broadcast %43 : vector<1x256xf32> to vector<4x256xf32>
    %45 = arith.mulf %42, %44 : vector<4x256xf32>
    %c0_19 = arith.constant 0 : index
    %c5_20 = arith.constant 5 : index
    %46 = vector.load %arg3[%c0_19, %c5_20] : memref<4x9xf32, #tpu.memory_space<vmem>>, vector<4x1xf32>
    %47 = vector.broadcast %46 : vector<4x1xf32> to vector<4x256xf32>
    %48 = arith.mulf %45, %47 : vector<4x256xf32>
    %49 = arith.addf %41, %48 : vector<4x256xf32>
    %c241_i32 = arith.constant 241 : i32
    %50 = tpu.dynamic_rotate %1 by %c241_i32 dim 1 : vector<4x256xf32>, i32 -> vector<4x256xf32>
    %c6 = arith.constant 6 : index
    %c0_21 = arith.constant 0 : index
    %51 = vector.load %arg2[%c6, %c0_21] : memref<9x256xf32, #tpu.memory_space<vmem>>, vector<1x256xf32>
    %52 = vector.broadcast %51 : vector<1x256xf32> to vector<4x256xf32>
    %53 = arith.mulf %50, %52 : vector<4x256xf32>
    %c0_22 = arith.constant 0 : index
    %c6_23 = arith.constant 6 : index
    %54 = vector.load %arg3[%c0_22, %c6_23] : memref<4x9xf32, #tpu.memory_space<vmem>>, vector<4x1xf32>
    %55 = vector.broadcast %54 : vector<4x1xf32> to vector<4x256xf32>
    %56 = arith.mulf %53, %55 : vector<4x256xf32>
    %57 = arith.addf %49, %56 : vector<4x256xf32>
    %c240_i32 = arith.constant 240 : i32
    %58 = tpu.dynamic_rotate %1 by %c240_i32 dim 1 : vector<4x256xf32>, i32 -> vector<4x256xf32>
    %c7 = arith.constant 7 : index
    %c0_24 = arith.constant 0 : index
    %59 = vector.load %arg2[%c7, %c0_24] : memref<9x256xf32, #tpu.memory_space<vmem>>, vector<1x256xf32>
    %60 = vector.broadcast %59 : vector<1x256xf32> to vector<4x256xf32>
    %61 = arith.mulf %58, %60 : vector<4x256xf32>
    %c0_25 = arith.constant 0 : index
    %c7_26 = arith.constant 7 : index
    %62 = vector.load %arg3[%c0_25, %c7_26] : memref<4x9xf32, #tpu.memory_space<vmem>>, vector<4x1xf32>
    %63 = vector.broadcast %62 : vector<4x1xf32> to vector<4x256xf32>
    %64 = arith.mulf %61, %63 : vector<4x256xf32>
    %65 = arith.addf %57, %64 : vector<4x256xf32>
    %c239_i32 = arith.constant 239 : i32
    %66 = tpu.dynamic_rotate %1 by %c239_i32 dim 1 : vector<4x256xf32>, i32 -> vector<4x256xf32>
    %c8 = arith.constant 8 : index
    %c0_27 = arith.constant 0 : index
    %67 = vector.load %arg2[%c8, %c0_27] : memref<9x256xf32, #tpu.memory_space<vmem>>, vector<1x256xf32>
    %68 = vector.broadcast %67 : vector<1x256xf32> to vector<4x256xf32>
    %69 = arith.mulf %66, %68 : vector<4x256xf32>
    %c0_28 = arith.constant 0 : index
    %c8_29 = arith.constant 8 : index
    %70 = vector.load %arg3[%c0_28, %c8_29] : memref<4x9xf32, #tpu.memory_space<vmem>>, vector<4x1xf32>
    %71 = vector.broadcast %70 : vector<4x1xf32> to vector<4x256xf32>
    %72 = arith.mulf %69, %71 : vector<4x256xf32>
    %73 = arith.addf %65, %72 : vector<4x256xf32>
    %c0_30 = arith.constant 0 : index
    %c0_31 = arith.constant 0 : index
    %74 = vector.load %arg4[%c0_30, %c0_31] : memref<4x1xf32, #tpu.memory_space<vmem>>, vector<4x1xf32>
    %75 = vector.broadcast %74 : vector<4x1xf32> to vector<4x256xf32>
    %76 = arith.mulf %73, %75 : vector<4x256xf32>
    %c0_32 = arith.constant 0 : index
    %c0_33 = arith.constant 0 : index
    %77 = vector.load %arg5[%c0_32, %c0_33] : memref<4x1xf32, #tpu.memory_space<vmem>>, vector<4x1xf32>
    %78 = vector.broadcast %77 : vector<4x1xf32> to vector<4x256xf32>
    %79 = arith.addf %76, %78 : vector<4x256xf32>
    %cst_34 = arith.constant 0.000000e+00 : f32
    %80 = vector.broadcast %cst_34 : f32 to vector<4x256xf32>
    %81 = arith.maximumf %79, %80 : vector<4x256xf32>
    %c0_35 = arith.constant 0 : index
    %c0_36 = arith.constant 0 : index
    %82 = vector.load %arg6[%c0_35, %c0_36] : memref<8x4xf32, #tpu.memory_space<vmem>>, vector<8x4xf32>
    %cst_37 = arith.constant dense<0.000000e+00> : vector<8x256xf32>
    %83 = tpu.matmul %82, %81, %cst_37 {dimension_numbers = #tpu.dot_dimension_numbers<[1], [0], [0], [1], [0, 0, 1, 1], [], []>} : vector<8x4xf32>, vector<4x256xf32>, vector<8x256xf32> -> vector<8x256xf32>
    %c0_38 = arith.constant 0 : index
    %c0_39 = arith.constant 0 : index
    %84 = vector.load %arg7[%c0_38, %c0_39] : memref<8x1xf32, #tpu.memory_space<vmem>>, vector<8x1xf32>
    %85 = vector.broadcast %84 : vector<8x1xf32> to vector<8x256xf32>
    %86 = arith.addf %83, %85 : vector<8x256xf32>
    %cst_40 = arith.constant 0.000000e+00 : f32
    %87 = vector.broadcast %cst_40 : f32 to vector<8x256xf32>
    %88 = arith.maximumf %86, %87 : vector<8x256xf32>
    %c0_41 = arith.constant 0 : index
    %c0_42 = arith.constant 0 : index
    %89 = vector.load %arg8[%c0_41, %c0_42] : memref<8x4xf32, #tpu.memory_space<vmem>>, vector<8x4xf32>
    %cst_43 = arith.constant dense<0.000000e+00> : vector<8x256xf32>
    %90 = tpu.matmul %89, %1, %cst_43 {dimension_numbers = #tpu.dot_dimension_numbers<[1], [0], [0], [1], [0, 0, 1, 1], [], []>} : vector<8x4xf32>, vector<4x256xf32>, vector<8x256xf32> -> vector<8x256xf32>
    %c0_44 = arith.constant 0 : index
    %c0_45 = arith.constant 0 : index
    %91 = vector.load %arg9[%c0_44, %c0_45] : memref<8x1xf32, #tpu.memory_space<vmem>>, vector<8x1xf32>
    %92 = vector.broadcast %91 : vector<8x1xf32> to vector<8x256xf32>
    %93 = arith.addf %90, %92 : vector<8x256xf32>
    %94 = arith.addf %88, %93 : vector<8x256xf32>
    %cst_46 = arith.constant 0.000000e+00 : f32
    %95 = vector.broadcast %cst_46 : f32 to vector<8x256xf32>
    %96 = arith.maximumf %94, %95 : vector<8x256xf32>
    %c0_47 = arith.constant 0 : index
    %c0_48 = arith.constant 0 : index
    %c0_49 = arith.constant 0 : index
    %97 = vector.load %arg10[%c0_47, %c0_48, %c0_49] : memref<1x8x256xf32, #tpu.memory_space<vmem>>, vector<1x8x256xf32>
    %98 = vector.shape_cast %97 : vector<1x8x256xf32> to vector<8x256xf32>
    %99 = vector.shape_cast %96 : vector<8x256xf32> to vector<1x8x256xf32>
    tpu.vector_store %arg10[%c0_47, %c0_48, %c0_49], %99 {strides = array<i32>} : memref<1x8x256xf32, #tpu.memory_space<vmem>>, vector<1x8x256xf32>,
    return
  }
  func.func @transform_0(%arg0: i32) -> (i32, i32, i32) {
    %c0_i32 = arith.constant 0 : i32
    %c0_i32_0 = arith.constant 0 : i32
    %c0_i32_1 = arith.constant 0 : i32
    return %arg0, %c0_i32, %c0_i32_0 : i32, i32, i32
  }
  func.func @transform_1(%arg0: i32) -> (i32, i32) {
    %c0_i32 = arith.constant 0 : i32
    %c0_i32_0 = arith.constant 0 : i32
    %c0_i32_1 = arith.constant 0 : i32
    return %c0_i32, %c0_i32_0 : i32, i32
  }
  func.func @transform_2(%arg0: i32) -> (i32, i32) {
    %c0_i32 = arith.constant 0 : i32
    %c0_i32_0 = arith.constant 0 : i32
    %c0_i32_1 = arith.constant 0 : i32
    return %c0_i32, %c0_i32_0 : i32, i32
  }
  func.func @transform_3(%arg0: i32) -> (i32, i32) {
    %c0_i32 = arith.constant 0 : i32
    %c0_i32_0 = arith.constant 0 : i32
    %c0_i32_1 = arith.constant 0 : i32
    return %c0_i32, %c0_i32_0 : i32, i32
  }
  func.func @transform_4(%arg0: i32) -> (i32, i32) {
    %c0_i32 = arith.constant 0 : i32
    %c0_i32_0 = arith.constant 0 : i32
    %c0_i32_1 = arith.constant 0 : i32
    return %c0_i32, %c0_i32_0 : i32, i32
  }
  func.func @transform_5(%arg0: i32) -> (i32, i32) {
    %c0_i32 = arith.constant 0 : i32
    %c0_i32_0 = arith.constant 0 : i32
    %c0_i32_1 = arith.constant 0 : i32
    return %c0_i32, %c0_i32_0 : i32, i32
  }
  func.func @transform_6(%arg0: i32) -> (i32, i32) {
    %c0_i32 = arith.constant 0 : i32
    %c0_i32_0 = arith.constant 0 : i32
    %c0_i32_1 = arith.constant 0 : i32
    return %c0_i32, %c0_i32_0 : i32, i32
  }
  func.func @transform_7(%arg0: i32) -> (i32, i32) {
    %c0_i32 = arith.constant 0 : i32
    %c0_i32_0 = arith.constant 0 : i32
    %c0_i32_1 = arith.constant 0 : i32
    return %c0_i32, %c0_i32_0 : i32, i32
  }
  func.func @transform_8(%arg0: i32) -> (i32, i32) {
    %c0_i32 = arith.constant 0 : i32
    %c0_i32_0 = arith.constant 0 : i32
    %c0_i32_1 = arith.constant 0 : i32
    return %c0_i32, %c0_i32_0 : i32, i32
  }
  func.func @transform_9(%arg0: i32) -> (i32, i32, i32) {
    %c0_i32 = arith.constant 0 : i32
    %c0_i32_0 = arith.constant 0 : i32
    %c0_i32_1 = arith.constant 0 : i32
    return %arg0, %c0_i32, %c0_i32_0 : i32, i32, i32
  }
}

</mosaic_0001>

<llo_original>
// kernel: tpu_custom_call.1
$region0: #{tpu_custom_call.1}
  #allocation0 [shape = 'u32[]', space=smem, size = 0x4, offset = 0x4, fixed_abs, tag = 'smem constant byte address 0x4 - core index']
  #allocation1 [shape = 'u32[144,128]{1,0:T(1,128)}', space=vmem, size = 0x12000, scoped, tag = 'internal scratch']
  %s0 = inlined_call_operand.vmem [shape: f32[2,4,256], index: 0, kind: input, shape index: {}]
  %s1 = inlined_call_operand.vmem [shape: f32[9,256], index: 1, kind: input, shape index: {}]
  %s2 = inlined_call_operand.hbm [shape: f32[4,9], index: 2, kind: input, shape index: {}]
  %s3 = inlined_call_operand.vmem [shape: f32[4,1], index: 3, kind: input, shape index: {}]
  %s4 = inlined_call_operand.vmem [shape: f32[4,1], index: 4, kind: input, shape index: {}]
  %s5 = inlined_call_operand.vmem [shape: f32[8,4], index: 5, kind: input, shape index: {}]
  %s6 = inlined_call_operand.vmem [shape: f32[8,1], index: 6, kind: input, shape index: {}]
  %s7 = inlined_call_operand.vmem [shape: f32[8,4], index: 7, kind: input, shape index: {}]
  %s8 = inlined_call_operand.vmem [shape: f32[8,1], index: 8, kind: input, shape index: {}]
  %s9 = inlined_call_operand.hbm [shape: f32[2,8,256], index: 9, kind: output, shape index: {}]
  %s10 = sld [smem:[#allocation0]]
  $region73: #{tpu_custom_call.1} parent=0
    _
  %s12 = ssub.s32 1, %s10
  %s13 = scalar_select 0, %s12, %s10
  $region1: #{tpu_custom_call.1} parent=0
    #allocation2 [shape = 'u8[2048]{0}', space=vmem, size = 0x800, scoped, tag = 'input window, operand 2, single buffered']
    #allocation3 [shape = 's32[2]{0}', space=sflag, size = 0x8, scoped, tag = 'scoped memory for tpu_custom_call.1']
    #allocation4 [shape = 's32[2]{0}', space=sflag, size = 0x8, scoped, tag = 'scoped memory for tpu_custom_call.1']
    #allocation5 [shape = 'u8[16384]{0}', space=vmem, size = 0x4000, scoped, tag = 'output window, operand 0']
    %14 = vsyncpa [#allocation3], 0
    %15 = vsyncpa [#allocation4], 0
    %s16 = scalar_lea.sflag [#allocation4], 1
    %17 = vsyncpa %s16, 0
    loop: start=0, step=1, limit=4
    $region2: #{tpu_custom_call.1} parent=1 // loop_pre_header
      _
    $region3: #{tpu_custom_call.1} parent=1 // loop_header
      %s19 = sphi 0, %s23
      %p20 = scmp.ge.s32.totalorder %s19, 4
      %s29 = sphi 0, %s31
      %s32 = sphi 0, %s29
      %s33 = sphi 0, %s32
      %s49 = sphi 0, %s33
      %s53 = sphi 0, %s53
      %s55 = sphi 0, %s53
      %s56 = sphi 0, %s55
      %s70 = sphi 0, %s56
      %s74 = sphi 0, %s74
      %s76 = sphi 0, %s74
      %s77 = sphi 0, %s76
      %s91 = sphi 0, %s77
      %s95 = sphi 0, %s95
      %s97 = sphi 0, %s95
      %s98 = sphi 0, %s97
      %s112 = sphi 0, %s98
      %s116 = sphi 0, %s116
      %s118 = sphi 0, %s116
      %s119 = sphi 0, %s118
      %s133 = sphi 0, %s119
      %s137 = sphi 0, %s137
      %s139 = sphi 0, %s137
      %s140 = sphi 0, %s139
      %s154 = sphi 0, %s140
      %s158 = sphi 0, %s158
      %s160 = sphi 0, %s158
      %s161 = sphi 0, %s160
      %s175 = sphi 0, %s161
      %s179 = sphi 0, %s179
      %s181 = sphi 0, %s179
      %s182 = sphi 0, %s181
      %s196 = sphi 0, %s182
      %s200 = sphi 0, %s200
      %s202 = sphi 0, %s200
      %s203 = sphi 0, %s202
      %s217 = sphi 0, %s203
      %s223 = sphi 0, %s225
      %s226 = sphi 0, %s223
      %s227 = sphi 0, %s226
      %s243 = sphi 0, %s227
    $region4: #{tpu_custom_call.1} parent=1 // loop_header_branch
      %22 = sbr.rel (%p20) target = $region8
    $region5: #{tpu_custom_call.1} parent=1 // loop_body
      %s24 = ssub.s32 %s19, 1
      %s25 = ssub.s32 %s19, 2
      %s26 = sadd.s32 %s19, 1
      %s27 = ssub.s32 %s19, %s26
      %p28 = scmp.eq.s32.totalorder %s27, 0
      %s30 = sadd.s32 %s29, 1
      %s31 = scalar_select %p28, %s29, %s30
      %p34 = pneg %p28
      %p35 = scmp.eq.s32.totalorder %s19, 1
      %p36 = por %p34, %p35
      %p37 = scmp.ne.s32.totalorder %s29, %s32
      %p38 = scmp.eq.s32.totalorder %s19, 0
      %p39 = por %p37, %p38
      %p40 = scmp.ne.s32.totalorder %s29, %s32
      %p41 = scmp.eq.s32.totalorder %s24, 1
      %p42 = por %p40, %p41
      %p43 = scmp.ne.s32.totalorder %s32, %s33
      %p44 = scmp.eq.s32.totalorder %s24, 0
      %p45 = por %p43, %p44
      %p46 = scmp.ne.s32.totalorder %s32, %s33
      %p47 = scmp.eq.s32.totalorder %s25, 1
      %p48 = por %p46, %p47
      %p50 = scmp.ne.s32.totalorder %s33, %s49
      %p51 = scmp.eq.s32.totalorder %s25, 0
      %p52 = por %p50, %p51
      %s54 = sadd.s32 %s53, 1
      %p57 = scmp.eq.s32.totalorder %s19, 1
      %p58 = scmp.ne.s32.totalorder %s53, %s55
      %p59 = scmp.eq.s32.totalorder %s19, 0
      %p60 = por %p58, %p59
      %p61 = scmp.ne.s32.totalorder %s53, %s55
      %p62 = scmp.eq.s32.totalorder %s24, 1
      %p63 = por %p61, %p62
      %p64 = scmp.ne.s32.totalorder %s55, %s56
      %p65 = scmp.eq.s32.totalorder %s24, 0
      %p66 = por %p64, %p65
      %p67 = scmp.ne.s32.totalorder %s55, %s56
      %p68 = scmp.eq.s32.totalorder %s25, 1
      %p69 = por %p67, %p68
      %p71 = scmp.ne.s32.totalorder %s56, %s70
      %p72 = scmp.eq.s32.totalorder %s25, 0
      %p73 = por %p71, %p72
      %s75 = sadd.s32 %s74, 1
      %p78 = scmp.eq.s32.totalorder %s19, 1
      %p79 = scmp.ne.s32.totalorder %s74, %s76
      %p80 = scmp.eq.s32.totalorder %s19, 0
      %p81 = por %p79, %p80
      %p82 = scmp.ne.s32.totalorder %s74, %s76
      %p83 = scmp.eq.s32.totalorder %s24, 1
      %p84 = por %p82, %p83
      %p85 = scmp.ne.s32.totalorder %s76, %s77
      %p86 = scmp.eq.s32.totalorder %s24, 0
      %p87 = por %p85, %p86
      %p88 = scmp.ne.s32.totalorder %s76, %s77
      %p89 = scmp.eq.s32.totalorder %s25, 1
      %p90 = por %p88, %p89
      %p92 = scmp.ne.s32.totalorder %s77, %s91
      %p93 = scmp.eq.s32.totalorder %s25, 0
      %p94 = por %p92, %p93
      %s96 = sadd.s32 %s95, 1
      %p99 = scmp.eq.s32.totalorder %s19, 1
      %p100 = scmp.ne.s32.totalorder %s95, %s97
      %p101 = scmp.eq.s32.totalorder %s19, 0
      %p102 = por %p100, %p101
      %p103 = scmp.ne.s32.totalorder %s95, %s97
      %p104 = scmp.eq.s32.totalorder %s24, 1
      %p105 = por %p103, %p104
      %p106 = scmp.ne.s32.totalorder %s97, %s98
      %p107 = scmp.eq.s32.totalorder %s24, 0
      %p108 = por %p106, %p107
      %p109 = scmp.ne.s32.totalorder %s97, %s98
      %p110 = scmp.eq.s32.totalorder %s25, 1
      %p111 = por %p109, %p110
      %p113 = scmp.ne.s32.totalorder %s98, %s112
      %p114 = scmp.eq.s32.totalorder %s25, 0
      %p115 = por %p113, %p114
      %s117 = sadd.s32 %s116, 1
      %p120 = scmp.eq.s32.totalorder %s19, 1
      %p121 = scmp.ne.s32.totalorder %s116, %s118
      %p122 = scmp.eq.s32.totalorder %s19, 0
      %p123 = por %p121, %p122
      %p124 = scmp.ne.s32.totalorder %s116, %s118
      %p125 = scmp.eq.s32.totalorder %s24, 1
      %p126 = por %p124, %p125
      %p127 = scmp.ne.s32.totalorder %s118, %s119
      %p128 = scmp.eq.s32.totalorder %s24, 0
      %p129 = por %p127, %p128
      %p130 = scmp.ne.s32.totalorder %s118, %s119
      %p131 = scmp.eq.s32.totalorder %s25, 1
      %p132 = por %p130, %p131
      %p134 = scmp.ne.s32.totalorder %s119, %s133
      %p135 = scmp.eq.s32.totalorder %s25, 0
      %p136 = por %p134, %p135
      %s138 = sadd.s32 %s137, 1
      %p141 = scmp.eq.s32.totalorder %s19, 1
      %p142 = scmp.ne.s32.totalorder %s137, %s139
      %p143 = scmp.eq.s32.totalorder %s19, 0
      %p144 = por %p142, %p143
      %p145 = scmp.ne.s32.totalorder %s137, %s139
      %p146 = scmp.eq.s32.totalorder %s24, 1
      %p147 = por %p145, %p146
      %p148 = scmp.ne.s32.totalorder %s139, %s140
      %p149 = scmp.eq.s32.totalorder %s24, 0
      %p150 = por %p148, %p149
      %p151 = scmp.ne.s32.totalorder %s139, %s140
      %p152 = scmp.eq.s32.totalorder %s25, 1
      %p153 = por %p151, %p152
      %p155 = scmp.ne.s32.totalorder %s140, %s154
      %p156 = scmp.eq.s32.totalorder %s25, 0
      %p157 = por %p155, %p156
      %s159 = sadd.s32 %s158, 1
      %p162 = scmp.eq.s32.totalorder %s19, 1
      %p163 = scmp.ne.s32.totalorder %s158, %s160
      %p164 = scmp.eq.s32.totalorder %s19, 0
      %p165 = por %p163, %p164
      %p166 = scmp.ne.s32.totalorder %s158, %s160
      %p167 = scmp.eq.s32.totalorder %s24, 1
      %p168 = por %p166, %p167
      %p169 = scmp.ne.s32.totalorder %s160, %s161
      %p170 = scmp.eq.s32.totalorder %s24, 0
      %p171 = por %p169, %p170
      %p172 = scmp.ne.s32.totalorder %s160, %s161
      %p173 = scmp.eq.s32.totalorder %s25, 1
      %p174 = por %p172, %p173
      %p176 = scmp.ne.s32.totalorder %s161, %s175
      %p177 = scmp.eq.s32.totalorder %s25, 0
      %p178 = por %p176, %p177
      %s180 = sadd.s32 %s179, 1
      %p183 = scmp.eq.s32.totalorder %s19, 1
      %p184 = scmp.ne.s32.totalorder %s179, %s181
      %p185 = scmp.eq.s32.totalorder %s19, 0
      %p186 = por %p184, %p185
      %p187 = scmp.ne.s32.totalorder %s179, %s181
      %p188 = scmp.eq.s32.totalorder %s24, 1
      %p189 = por %p187, %p188
      %p190 = scmp.ne.s32.totalorder %s181, %s182
      %p191 = scmp.eq.s32.totalorder %s24, 0
      %p192 = por %p190, %p191
      %p193 = scmp.ne.s32.totalorder %s181, %s182
      %p194 = scmp.eq.s32.totalorder %s25, 1
      %p195 = por %p193, %p194
      %p197 = scmp.ne.s32.totalorder %s182, %s196
      %p198 = scmp.eq.s32.totalorder %s25, 0
      %p199 = por %p197, %p198
      %s201 = sadd.s32 %s200, 1
      %p204 = scmp.eq.s32.totalorder %s19, 1
      %p205 = scmp.ne.s32.totalorder %s200, %s202
      %p206 = scmp.eq.s32.totalorder %s19, 0
      %p207 = por %p205, %p206
      %p208 = scmp.ne.s32.totalorder %s200, %s202
      %p209 = scmp.eq.s32.totalorder %s24, 1
      %p210 = por %p208, %p209
      %p211 = scmp.ne.s32.totalorder %s202, %s203
      %p212 = scmp.eq.s32.totalorder %s24, 0
      %p213 = por %p211, %p212
      %p214 = scmp.ne.s32.totalorder %s202, %s203
      %p215 = scmp.eq.s32.totalorder %s25, 1
      %p216 = por %p214, %p215
      %p218 = scmp.ne.s32.totalorder %s203, %s217
      %p219 = scmp.eq.s32.totalorder %s25, 0
      %p220 = por %p218, %p219
      %s221 = ssub.s32 %s19, %s26
      %p222 = scmp.eq.s32.totalorder %s221, 0
      %s224 = sadd.s32 %s223, 1
      %s225 = scalar_select %p222, %s223, %s224
      %p228 = pneg %p222
      %p229 = scmp.eq.s32.totalorder %s19, 1
      %p230 = por %p228, %p229
      %p231 = scmp.ne.s32.totalorder %s223, %s226
      %p232 = scmp.eq.s32.totalorder %s19, 0
      %p233 = por %p231, %p232
      %p234 = scmp.ne.s32.totalorder %s223, %s226
      %p235 = scmp.eq.s32.totalorder %s24, 1
      %p236 = por %p234, %p235
      %p237 = scmp.ne.s32.totalorder %s226, %s227
      %p238 = scmp.eq.s32.totalorder %s24, 0
      %p239 = por %p237, %p238
      %p240 = scmp.ne.s32.totalorder %s226, %s227
      %p241 = scmp.eq.s32.totalorder %s25, 1
      %p242 = por %p240, %p241
      %p244 = scmp.ne.s32.totalorder %s227, %s243
      %p245 = scmp.eq.s32.totalorder %s25, 0
      %p246 = por %p244, %p245
      %p247 = scmp.le.s32.totalorder 1, %s19
      %p248 = scmp.lt.s32.totalorder %s19, 3
      %p249 = pnand %p247, %p248
      %p250 = pneg %p249
      // Predicated region
      $region9: #{tpu_custom_call.1} parent=5 // pred_check
        _
      $region10: #{tpu_custom_call.1} parent=5 // pred_check_branch
        %252 = sbr.rel (%p249) target = $region12
      $region11: #{tpu_custom_call.1} parent=5 // pred_region
        %s253 = ssub.s32 %s19, 1
        // Predicated region
        $region13: #{tpu_custom_call.1} parent=11 // pred_check
          %p254 = pneg %p66
        $region14: #{tpu_custom_call.1} parent=11 // pred_check_branch
          %256 = sbr.rel (%p254) target = $region16
        $region15: #{tpu_custom_call.1} parent=11 // pred_region
          _
        $region16: #{tpu_custom_call.1} parent=11 // pred_fallthru
          _
        // Predicated region
        $region17: #{tpu_custom_call.1} parent=11 // pred_check
          %p257 = pneg %p87
        $region18: #{tpu_custom_call.1} parent=11 // pred_check_branch
          %259 = sbr.rel (%p257) target = $region20
        $region19: #{tpu_custom_call.1} parent=11 // pred_region
          %s261 = ssub.s32 64, 64
          %262 = vsyncadd [#allocation3], %s261
          %s264 = sshll.u32 [#allocation2], 4
          %s265 = int_to_ptr.vmem [resolvable:$true] %s264
          %267 = dma.hbm_to_vmem [thread:$0]  %s2, 64, %s265, [#allocation3]
        $region20: #{tpu_custom_call.1} parent=11 // pred_fallthru
          _
        // Predicated region
        $region21: #{tpu_custom_call.1} parent=11 // pred_check
          %p268 = pneg %p108
        $region22: #{tpu_custom_call.1} parent=11 // pred_check_branch
          %270 = sbr.rel (%p268) target = $region24
        $region23: #{tpu_custom_call.1} parent=11 // pred_region
          _
        $region24: #{tpu_custom_call.1} parent=11 // pred_fallthru
          _
        // Predicated region
        $region25: #{tpu_custom_call.1} parent=11 // pred_check
          %p271 = pneg %p129
        $region26: #{tpu_custom_call.1} parent=11 // pred_check_branch
          %273 = sbr.rel (%p271) target = $region28
        $region27: #{tpu_custom_call.1} parent=11 // pred_region
          _
        $region28: #{tpu_custom_call.1} parent=11 // pred_fallthru
          _
        // Predicated region
        $region29: #{tpu_custom_call.1} parent=11 // pred_check
          %p274 = pneg %p150
        $region30: #{tpu_custom_call.1} parent=11 // pred_check_branch
          %276 = sbr.rel (%p274) target = $region32
        $region31: #{tpu_custom_call.1} parent=11 // pred_region
          _
        $region32: #{tpu_custom_call.1} parent=11 // pred_fallthru
          _
        // Predicated region
        $region33: #{tpu_custom_call.1} parent=11 // pred_check
          %p277 = pneg %p171
        $region34: #{tpu_custom_call.1} parent=11 // pred_check_branch
          %279 = sbr.rel (%p277) target = $region36
        $region35: #{tpu_custom_call.1} parent=11 // pred_region
          _
        $region36: #{tpu_custom_call.1} parent=11 // pred_fallthru
          _
        // Predicated region
        $region37: #{tpu_custom_call.1} parent=11 // pred_check
          %p280 = pneg %p192
        $region38: #{tpu_custom_call.1} parent=11 // pred_check_branch
          %282 = sbr.rel (%p280) target = $region40
        $region39: #{tpu_custom_call.1} parent=11 // pred_region
          _
        $region40: #{tpu_custom_call.1} parent=11 // pred_fallthru
          _
        // Predicated region
        $region41: #{tpu_custom_call.1} parent=11 // pred_check
          %p283 = pneg %p213
        $region42: #{tpu_custom_call.1} parent=11 // pred_check_branch
          %285 = sbr.rel (%p283) target = $region44
        $region43: #{tpu_custom_call.1} parent=11 // pred_region
          _
        $region44: #{tpu_custom_call.1} parent=11 // pred_fallthru
          _
      $region12: #{tpu_custom_call.1} parent=5 // pred_fallthru
        _
      %p286 = scmp.lt.s32.totalorder %s19, 2
      // Predicated region
      $region45: #{tpu_custom_call.1} parent=5 // pred_check
        %p287 = pneg %p286
      $region46: #{tpu_custom_call.1} parent=5 // pred_check_branch
        %289 = sbr.rel (%p287) target = $region48
      $region47: #{tpu_custom_call.1} parent=5 // pred_region
        // Predicated region
        $region49: #{tpu_custom_call.1} parent=47 // pred_check
          %p290 = pneg %p39
        $region50: #{tpu_custom_call.1} parent=47 // pred_check_branch
          %292 = sbr.rel (%p290) target = $region52
        $region51: #{tpu_custom_call.1} parent=47 // pred_region
          %p293 = scmp.lt.s32.totalorder %s19, 1
          %s294 = scalar_select %p293, %s19, 1
          %s295 = smul.addr %s294, 2
          %s296 = smul.addr %s295, 4
          %s297 = scalar_lea.vmem %s0, %s296
        $region52: #{tpu_custom_call.1} parent=47 // pred_fallthru
          _
      $region48: #{tpu_custom_call.1} parent=5 // pred_fallthru
        _
      %p298 = scmp.le.s32.totalorder 1, %s19
      %p299 = scmp.lt.s32.totalorder %s19, 3
      %p300 = pnand %p298, %p299
      %p301 = pneg %p300
      // Predicated region
      $region53: #{tpu_custom_call.1} parent=5 // pred_check
        _
      $region54: #{tpu_custom_call.1} parent=5 // pred_check_branch
        %303 = sbr.rel (%p300) target = $region56
      $region55: #{tpu_custom_call.1} parent=5 // pred_region
        %s304 = ssub.s32 %s19, 1
        // Predicated region
        $region57: #{tpu_custom_call.1} parent=55 // pred_check
          %p305 = pneg %p87
        $region58: #{tpu_custom_call.1} parent=55 // pred_check_branch
          %307 = sbr.rel (%p305) target = $region60
        $region59: #{tpu_custom_call.1} parent=55 // pred_region
          %308 = dma.done [#allocation3], 64
        $region60: #{tpu_custom_call.1} parent=55 // pred_fallthru
          _
        %p309 = scmp.lt.s32.totalorder %s24, 1
        %s310 = scalar_select %p309, %s24, 1
        %s311 = smul.addr %s310, 2
        %s312 = smul.addr %s311, 4
        %s313 = scalar_lea.vmem %s0, %s312
        %p314 = pneg %p45
        %p315 = pneg %p42
        %p316 = pneg %p66
        %p317 = pneg %p63
        %p318 = pneg %p87
        %p319 = pneg %p84
        %p320 = pneg %p108
        %p321 = pneg %p105
        %p322 = pneg %p129
        %p323 = pneg %p126
        %p324 = pneg %p150
        %p325 = pneg %p147
        %p326 = pneg %p171
        %p327 = pneg %p168
        %p328 = pneg %p192
        %p329 = pneg %p189
        %p330 = pneg %p213
        %p331 = pneg %p210
        %p332 = pneg %p239
        %p333 = pneg %p236
        %s334 = sand.u32 %s226, 1
        %s335 = scalar_lea.sflag [#allocation4], %s334
        %s336 = sand.u32 %s226, 1
        %s337 = smul.addr %s336, 16
        %s338 = scalar_lea.vmem [#allocation5], %s337
        %p339 = scmp.lt.s32.totalorder %s24, 1
        %s340 = scalar_select %p339, %s24, 1
        %s341 = smul.addr %s340, 2
        %s342 = smul.addr %s341, 4
        %s343 = scalar_lea.vmem %s0, %s342
        %v344 = vld [vmem:[%s343] sm:$0xff]
        %v346 = vcombine.high %v344, %v344
        %348 = vrot.lane.b32.xlu0 %v344, 17
        %v349 = vpop.permute.xlu0 %348
        %350 = vrot.lane.b32.xlu0 %v346, 17
        %v351 = vpop.permute.xlu0 %350
        %v352 = vlaneseq
        %v353 = vand.u32 %v352, 127
        %vm354 = vcmp.lt.s32.totalorder %v353, 17
        %v355 = vsel %vm354, %v349, %v351
        %v356 = vsel %vm354, %v351, %v349
        %v357 = vld [vmem:[%s1] ss:$8 sm:$0x3]
        %v359 = vlaneseq
        %v360 = vshrl.u32 %v359, 7
        %v361 = vsub.s32 0, %v360
        %v362 = vrot.slane %v357, %v361
        %v363 = vlaneseq
        %v364 = vshrl.u32 %v363, 7
        %v365 = vsub.s32 1, %v364
        %v366 = vrot.slane %v357, %v365
        %v369 = vmul.f32 %v356, %v362
        %v370 = vmul.f32 %v355, %v366
        %v371 = vld [vmem:[#allocation2] sm:$0xf]
        %373 = vset.pattern.permute.xlu0 0
        %374 = vperm.xlu0 %373, %v371
        %v375 = vpop.permute.xlu0 %374
        %v377 = vmul.f32 %v369, %v375
        %v378 = vmul.f32 %v370, %v375
        %v379 = vadd.f32 %v377, 0.0
        %v380 = vadd.f32 %v378, 0.0
        %381 = vrot.lane.b32.xlu0 %v344, 16
        %v382 = vpop.permute.xlu0 %381
        %383 = vrot.lane.b32.xlu0 %v346, 16
        %v384 = vpop.permute.xlu0 %383
        %vm385 = vcmp.lt.s32.totalorder %v353, 16
        %v386 = vsel %vm385, %v382, %v384
        %v387 = vsel %vm385, %v384, %v382
        %s388 = scalar_lea.vmem %s1, 1
        %v389 = vld [vmem:[%s388] ss:$8 sm:$0x3]
        %v391 = vlaneseq
        %v392 = vshrl.u32 %v391, 7
        %v393 = vsub.s32 0, %v392
        %v394 = vrot.slane %v389, %v393
        %v395 = vlaneseq
        %v396 = vshrl.u32 %v395, 7
        %v397 = vsub.s32 1, %v396
        %v398 = vrot.slane %v389, %v397
        %v401 = vmul.f32 %v387, %v394
        %v402 = vmul.f32 %v386, %v398
        %v403 = vld [vmem:[#allocation2] sm:$0xf]
        %405 = vset.pattern.permute.xlu0 1
        %406 = vperm.xlu0 %405, %v403
        %v407 = vpop.permute.xlu0 %406
        %v409 = vmul.f32 %v401, %v407
        %v410 = vmul.f32 %v402, %v407
        %v411 = vadd.f32 %v379, %v409
        %v412 = vadd.f32 %v380, %v410
        %413 = vrot.lane.b32.xlu0 %v344, 15
        %v414 = vpop.permute.xlu0 %413
        %415 = vrot.lane.b32.xlu0 %v346, 15
        %v416 = vpop.permute.xlu0 %415
        %vm417 = vcmp.lt.s32.totalorder %v353, 15
        %v418 = vsel %vm417, %v414, %v416
        %v419 = vsel %vm417, %v416, %v414
        %s420 = scalar_lea.vmem %s1, 2
        %v421 = vld [vmem:[%s420] ss:$8 sm:$0x3]
        %v423 = vlaneseq
        %v424 = vshrl.u32 %v423, 7
        %v425 = vsub.s32 0, %v424
        %v426 = vrot.slane %v421, %v425
        %v427 = vlaneseq
        %v428 = vshrl.u32 %v427, 7
        %v429 = vsub.s32 1, %v428
        %v430 = vrot.slane %v421, %v429
        %v433 = vmul.f32 %v419, %v426
        %v434 = vmul.f32 %v418, %v430
        %v435 = vld [vmem:[#allocation2] sm:$0xf]
        %437 = vset.pattern.permute.xlu0 2
        %438 = vperm.xlu0 %437, %v435
        %v439 = vpop.permute.xlu0 %438
        %v441 = vmul.f32 %v433, %v439
        %v442 = vmul.f32 %v434, %v439
        %v443 = vadd.f32 %v411, %v441
        %v444 = vadd.f32 %v412, %v442
        %445 = vrot.lane.b32.xlu0 %v344, 1
        %v446 = vpop.permute.xlu0 %445
        %447 = vrot.lane.b32.xlu0 %v346, 1
        %v448 = vpop.permute.xlu0 %447
        %vm449 = vcmp.lt.s32.totalorder %v353, 1
        %v450 = vsel %vm449, %v446, %v448
        %v451 = vsel %vm449, %v448, %v446
        %s452 = scalar_lea.vmem %s1, 3
        %v453 = vld [vmem:[%s452] ss:$8 sm:$0x3]
        %v455 = vlaneseq
        %v456 = vshrl.u32 %v455, 7
        %v457 = vsub.s32 0, %v456
        %v458 = vrot.slane %v453, %v457
        %v459 = vlaneseq
        %v460 = vshrl.u32 %v459, 7
        %v461 = vsub.s32 1, %v460
        %v462 = vrot.slane %v453, %v461
        %v465 = vmul.f32 %v451, %v458
        %v466 = vmul.f32 %v450, %v462
        %v467 = vld [vmem:[#allocation2] sm:$0xf]
        %469 = vset.pattern.permute.xlu0 3
        %470 = vperm.xlu0 %469, %v467
        %v471 = vpop.permute.xlu0 %470
        %v473 = vmul.f32 %v465, %v471
        %v474 = vmul.f32 %v466, %v471
        %v475 = vadd.f32 %v443, %v473
        %v476 = vadd.f32 %v444, %v474
        %s477 = scalar_lea.vmem %s1, 4
        %v478 = vld [vmem:[%s477] ss:$8 sm:$0x3]
        %v480 = vlaneseq
        %v481 = vshrl.u32 %v480, 7
        %v482 = vsub.s32 0, %v481
        %v483 = vrot.slane %v478, %v482
        %v484 = vlaneseq
        %v485 = vshrl.u32 %v484, 7
        %v486 = vsub.s32 1, %v485
        %v487 = vrot.slane %v478, %v486
        %v488 = vcombine.low %v483, %v487
        %v490 = vmul.f32 %v344, %v488
        %v491 = vld [vmem:[#allocation2] sm:$0xf]
        %493 = vset.pattern.permute.xlu0 4
        %494 = vperm.xlu0 %493, %v491
        %v495 = vpop.permute.xlu0 %494
        %v497 = vunpack.c.l.s4 839922192
        %v498 = vunpack.c.0.s8 %v497
        %v499 = vlaneseq
        %v500 = vshrl.u32 %v499, 7
        %v501 = vsub.s32 %v498, %v500
        %v502 = vrot.slane %v495, %v501
        %v504 = vmul.f32 %v490, %v502
        %v506 = vcombine.high %v504, %v504
        %v508 = vadd.f32 %v475, %v504
        %v509 = vadd.f32 %v476, %v506
        %510 = vrot.lane.b32.xlu0 %v344, 127
        %v511 = vpop.permute.xlu0 %510
        %512 = vrot.lane.b32.xlu0 %v346, 127
        %v513 = vpop.permute.xlu0 %512
        %vm514 = vcmp.lt.s32.totalorder %v353, 127
        %v515 = vsel %vm514, %v511, %v513
        %v516 = vsel %vm514, %v513, %v511
        %s517 = scalar_lea.vmem %s1, 5
        %v518 = vld [vmem:[%s517] ss:$8 sm:$0x3]
        %v520 = vlaneseq
        %v521 = vshrl.u32 %v520, 7
        %v522 = vsub.s32 0, %v521
        %v523 = vrot.slane %v518, %v522
        %v524 = vlaneseq
        %v525 = vshrl.u32 %v524, 7
        %v526 = vsub.s32 1, %v525
        %v527 = vrot.slane %v518, %v526
        %v530 = vmul.f32 %v515, %v523
        %v531 = vmul.f32 %v516, %v527
        %v532 = vld [vmem:[#allocation2] sm:$0xf]
        %534 = vset.pattern.permute.xlu0 5
        %535 = vperm.xlu0 %534, %v532
        %v536 = vpop.permute.xlu0 %535
        %v538 = vmul.f32 %v530, %v536
        %v539 = vmul.f32 %v531, %v536
        %v540 = vadd.f32 %v508, %v538
        %v541 = vadd.f32 %v509, %v539
        %542 = vrot.lane.b32.xlu0 %v344, 113
        %v543 = vpop.permute.xlu0 %542
        %544 = vrot.lane.b32.xlu0 %v346, 113
        %v545 = vpop.permute.xlu0 %544
        %vm546 = vcmp.lt.s32.totalorder %v353, 113
        %v547 = vsel %vm546, %v543, %v545
        %v548 = vsel %vm546, %v545, %v543
        %s549 = scalar_lea.vmem %s1, 6
        %v550 = vld [vmem:[%s549] ss:$8 sm:$0x3]
        %v552 = vlaneseq
        %v553 = vshrl.u32 %v552, 7
        %v554 = vsub.s32 0, %v553
        %v555 = vrot.slane %v550, %v554
        %v556 = vlaneseq
        %v557 = vshrl.u32 %v556, 7
        %v558 = vsub.s32 1, %v557
        %v559 = vrot.slane %v550, %v558
        %v562 = vmul.f32 %v547, %v555
        %v563 = vmul.f32 %v548, %v559
        %v564 = vld [vmem:[#allocation2] sm:$0xf]
        %566 = vset.pattern.permute.xlu0 6
        %567 = vperm.xlu0 %566, %v564
        %v568 = vpop.permute.xlu0 %567
        %v570 = vmul.f32 %v562, %v568
        %v571 = vmul.f32 %v563, %v568
        %v572 = vadd.f32 %v540, %v570
        %v573 = vadd.f32 %v541, %v571
        %574 = vrot.lane.b32.xlu0 %v344, 112
        %v575 = vpop.permute.xlu0 %574
        %576 = vrot.lane.b32.xlu0 %v346, 112
        %v577 = vpop.permute.xlu0 %576
        %vm578 = vcmp.lt.s32.totalorder %v353, 112
        %v579 = vsel %vm578, %v575, %v577
        %v580 = vsel %vm578, %v577, %v575
        %s581 = scalar_lea.vmem %s1, 7
        %v582 = vld [vmem:[%s581] ss:$8 sm:$0x3]
        %v584 = vlaneseq
        %v585 = vshrl.u32 %v584, 7
        %v586 = vsub.s32 0, %v585
        %v587 = vrot.slane %v582, %v586
        %v588 = vlaneseq
        %v589 = vshrl.u32 %v588, 7
        %v590 = vsub.s32 1, %v589
        %v591 = vrot.slane %v582, %v590
        %v594 = vmul.f32 %v579, %v587
        %v595 = vmul.f32 %v580, %v591
        %v596 = vld [vmem:[#allocation2] sm:$0xf]
        %598 = vset.pattern.permute.xlu0 7
        %599 = vperm.xlu0 %598, %v596
        %v600 = vpop.permute.xlu0 %599
        %v602 = vmul.f32 %v594, %v600
        %v603 = vmul.f32 %v595, %v600
        %v604 = vadd.f32 %v572, %v602
        %v605 = vadd.f32 %v573, %v603
        %606 = vrot.lane.b32.xlu0 %v344, 111
        %v607 = vpop.permute.xlu0 %606
        %608 = vrot.lane.b32.xlu0 %v346, 111
        %v609 = vpop.permute.xlu0 %608
        %vm610 = vcmp.lt.s32.totalorder %v353, 111
        %v611 = vsel %vm610, %v607, %v609
        %v612 = vsel %vm610, %v609, %v607
        %s613 = scalar_lea.vmem %s1, 16
        %v614 = vld [vmem:[%s613] ss:$8 sm:$0x3]
        %v616 = vlaneseq
        %v617 = vshrl.u32 %v616, 7
        %v618 = vsub.s32 0, %v617
        %v619 = vrot.slane %v614, %v618
        %v620 = vlaneseq
        %v621 = vshrl.u32 %v620, 7
        %v622 = vsub.s32 1, %v621
        %v623 = vrot.slane %v614, %v622
        %v626 = vmul.f32 %v611, %v619
        %v627 = vmul.f32 %v612, %v623
        %v628 = vld [vmem:[#allocation2] sm:$0xf]
        %630 = vset.pattern.permute.xlu0 8
        %631 = vperm.xlu0 %630, %v628
        %v632 = vpop.permute.xlu0 %631
        %v634 = vmul.f32 %v626, %v632
        %v635 = vmul.f32 %v627, %v632
        %v636 = vadd.f32 %v604, %v634
        %v637 = vadd.f32 %v605, %v635
        %v638 = vld [vmem:[%s3] sm:$0xf]
        %640 = vset.pattern.permute.xlu0 0
        %641 = vperm.xlu0 %640, %v638
        %v642 = vpop.permute.xlu0 %641
        %v644 = vmul.f32 %v636, %v642
        %v645 = vmul.f32 %v637, %v642
        %v646 = vld [vmem:[%s4] sm:$0xf]
        %648 = vset.pattern.permute.xlu0 0
        %649 = vperm.xlu0 %648, %v646
        %v650 = vpop.permute.xlu0 %649
        %v652 = vadd.f32 %v644, %v650
        %v653 = vadd.f32 %v645, %v650
        %v654 = vmax.f32 %v652, 0.0
        %v655 = vmax.f32 %v653, 0.0
        %v656 = vld [vmem:[%s5] sm:$0xff]
        %v657 = vld [vmem:[%s6] sm:$0xff]
        %659 = vset.pattern.permute.xlu0 0
        %660 = vperm.xlu0 %659, %v657
        %v661 = vpop.permute.xlu0 %660
        %vm663 = vcmask 31744
        %v665 = vsel %vm663, %v656, 0
        %vm667 = vcmask 1043456
        %v669 = vsel %vm667, %v654, 0
        %v672 = vsel %vm667, %v655, 0
        %674 = vmatprep.subr.mxu0 %v672
        %675 = vmatpush1.msra.mxu0 %v669
        %676 = vmatprep.subr.mxu0 0.0
        %677 = vmatpush1.msra.mxu0 0.0
        %678 = vmatprep.subr.mxu0 0.0
        %679 = vmatpush1.msra.mxu0 0.0
        %680 = vmatprep.subr.mxu0 0.0
        %681 = vmatpush1.msra.mxu0 0.0
        %682 = vmatprep.subr.mxu0 0.0
        %683 = vmatpush1.msra.mxu0 0.0
        %684 = vmatprep.subr.mxu0 0.0
        %685 = vmatpush1.msra.mxu0 0.0
        %686 = vmatprep.subr.mxu0 0.0
        %687 = vmatpush1.msra.mxu0 0.0
        %688 = vmatprep.subr.mxu0 0.0
        %689 = vmatpush1.msra.mxu0 0.0
        %690 = vmatprep.subr.mxu0 0.0
        %691 = vmatpush1.msra.mxu0 0.0
        %692 = vmatprep.subr.mxu0 0.0
        %693 = vmatpush1.msra.mxu0 0.0
        %694 = vmatprep.subr.mxu0 0.0
        %695 = vmatpush1.msra.mxu0 0.0
        %696 = vmatprep.subr.mxu0 0.0
        %697 = vmatpush1.msra.mxu0 0.0
        %698 = vmatprep.subr.mxu0 0.0
        %699 = vmatpush1.msra.mxu0 0.0
        %700 = vmatprep.subr.mxu0 0.0
        %701 = vmatpush1.msra.mxu0 0.0
        %702 = vmatprep.subr.mxu0 0.0
        %703 = vmatpush1.msra.mxu0 0.0
        %704 = vmatprep.subr.mxu0 0.0
        %705 = vmatpush1.msra.mxu0 0.0
        %706 = vmatprep.subr.mxu0 0.0
        %707 = vmatpush1.msra.mxu0 0.0
        %708 = vmatprep.subr.mxu0 0.0
        %709 = vmatpush1.msra.mxu0 0.0
        %710 = vmatprep.subr.mxu0 0.0
        %711 = vmatpush1.msra.mxu0 0.0
        %712 = vmatprep.subr.mxu0 0.0
        %713 = vmatpush1.msra.mxu0 0.0
        %714 = vmatprep.subr.mxu0 0.0
        %715 = vmatpush1.msra.mxu0 0.0
        %716 = vmatprep.subr.mxu0 0.0
        %717 = vmatpush1.msra.mxu0 0.0
        %718 = vmatprep.subr.mxu0 0.0
        %719 = vmatpush1.msra.mxu0 0.0
        %720 = vmatprep.subr.mxu0 0.0
        %721 = vmatpush1.msra.mxu0 0.0
        %722 = vmatprep.subr.mxu0 0.0
        %723 = vmatpush1.msra.mxu0 0.0
        %724 = vmatprep.subr.mxu0 0.0
        %725 = vmatpush1.msra.mxu0 0.0
        %726 = vmatprep.subr.mxu0 0.0
        %727 = vmatpush1.msra.mxu0 0.0
        %728 = vmatprep.subr.mxu0 0.0
        %729 = vmatpush1.msra.mxu0 0.0
        %730 = vmatprep.subr.mxu0 0.0
        %731 = vmatpush1.msra.mxu0 0.0
        %732 = vmatprep.subr.mxu0 0.0
        %733 = vmatpush1.msra.mxu0 0.0
        %734 = vmatprep.subr.mxu0 0.0
        %735 = vmatpush1.msra.mxu0 0.0
        %736 = vmatprep.subr.mxu0 0.0
        %737 = vmatpush1.msra.mxu0 0.0
        %738 = vmatprep.mubr.f32.mxu0 0.0
        %739 = vmatmul.mubr.f32.gmra.mrb[0].mxu0 %v665
        %v740 = vpop.f32.mrb[0].mxu0
        %v741 = vadd.f32 %v661, %v740
        %v742 = vpop.f32.mrb[0].mxu0
        %v743 = vadd.f32 %v661, %v742
        %744 = vdwg.mxu0
        %v745 = vmax.f32 %v741, 0.0
        %v746 = vmax.f32 %v743, 0.0
        %v747 = vld [vmem:[%s7] sm:$0xff]
        %v748 = vld [vmem:[%s8] sm:$0xff]
        %750 = vset.pattern.permute.xlu0 0
        %751 = vperm.xlu0 %750, %v748
        %v752 = vpop.permute.xlu0 %751
        %v755 = vsel %vm663, %v747, 0
        %v757 = vsel %vm667, %v344, 0
        %v759 = vsel %vm667, %v346, 0
        %761 = vmatprep.subr.mxu0 %v759
        %762 = vmatpush1.msra.mxu0 %v757
        %763 = vmatprep.subr.mxu0 0.0
        %764 = vmatpush1.msra.mxu0 0.0
        %765 = vmatprep.subr.mxu0 0.0
        %766 = vmatpush1.msra.mxu0 0.0
        %767 = vmatprep.subr.mxu0 0.0
        %768 = vmatpush1.msra.mxu0 0.0
        %769 = vmatprep.subr.mxu0 0.0
        %770 = vmatpush1.msra.mxu0 0.0
        %771 = vmatprep.subr.mxu0 0.0
        %772 = vmatpush1.msra.mxu0 0.0
        %773 = vmatprep.subr.mxu0 0.0
        %774 = vmatpush1.msra.mxu0 0.0
        %775 = vmatprep.subr.mxu0 0.0
        %776 = vmatpush1.msra.mxu0 0.0
        %777 = vmatprep.subr.mxu0 0.0
        %778 = vmatpush1.msra.mxu0 0.0
        %779 = vmatprep.subr.mxu0 0.0
        %780 = vmatpush1.msra.mxu0 0.0
        %781 = vmatprep.subr.mxu0 0.0
        %782 = vmatpush1.msra.mxu0 0.0
        %783 = vmatprep.subr.mxu0 0.0
        %784 = vmatpush1.msra.mxu0 0.0
        %785 = vmatprep.subr.mxu0 0.0
        %786 = vmatpush1.msra.mxu0 0.0
        %787 = vmatprep.subr.mxu0 0.0
        %788 = vmatpush1.msra.mxu0 0.0
        %789 = vmatprep.subr.mxu0 0.0
        %790 = vmatpush1.msra.mxu0 0.0
        %791 = vmatprep.subr.mxu0 0.0
        %792 = vmatpush1.msra.mxu0 0.0
        %793 = vmatprep.subr.mxu0 0.0
        %794 = vmatpush1.msra.mxu0 0.0
        %795 = vmatprep.subr.mxu0 0.0
        %796 = vmatpush1.msra.mxu0 0.0
        %797 = vmatprep.subr.mxu0 0.0
        %798 = vmatpush1.msra.mxu0 0.0
        %799 = vmatprep.subr.mxu0 0.0
        %800 = vmatpush1.msra.mxu0 0.0
        %801 = vmatprep.subr.mxu0 0.0
        %802 = vmatpush1.msra.mxu0 0.0
        %803 = vmatprep.subr.mxu0 0.0
        %804 = vmatpush1.msra.mxu0 0.0
        %805 = vmatprep.subr.mxu0 0.0
        %806 = vmatpush1.msra.mxu0 0.0
        %807 = vmatprep.subr.mxu0 0.0
        %808 = vmatpush1.msra.mxu0 0.0
        %809 = vmatprep.subr.mxu0 0.0
        %810 = vmatpush1.msra.mxu0 0.0
        %811 = vmatprep.subr.mxu0 0.0
        %812 = vmatpush1.msra.mxu0 0.0
        %813 = vmatprep.subr.mxu0 0.0
        %814 = vmatpush1.msra.mxu0 0.0
        %815 = vmatprep.subr.mxu0 0.0
        %816 = vmatpush1.msra.mxu0 0.0
        %817 = vmatprep.subr.mxu0 0.0
        %818 = vmatpush1.msra.mxu0 0.0
        %819 = vmatprep.subr.mxu0 0.0
        %820 = vmatpush1.msra.mxu0 0.0
        %821 = vmatprep.subr.mxu0 0.0
        %822 = vmatpush1.msra.mxu0 0.0
        %823 = vmatprep.subr.mxu0 0.0
        %824 = vmatpush1.msra.mxu0 0.0
        %825 = vmatprep.mubr.f32.mxu0 0.0
        %826 = vmatmul.mubr.f32.gmra.mrb[0].mxu0 %v755
        %v827 = vpop.f32.mrb[0].mxu0
        %v828 = vadd.f32 %v752, %v827
        %v829 = vpop.f32.mrb[0].mxu0
        %v830 = vadd.f32 %v752, %v829
        %831 = vdwg.mxu0
        %v832 = vadd.f32 %v745, %v828
        %v833 = vadd.f32 %v746, %v830
        %v834 = vmax.f32 %v832, 0.0
        %v835 = vmax.f32 %v833, 0.0
        %836 = vst [vmem:[%s338] sm:$0xff] %v834
        %837 = vst [vmem:[%s338 + $0x8] sm:$0xff] %v835
        %s838 = sand.u32 %s226, 1
        %s839 = scalar_lea.sflag [#allocation4], %s838
        %s840 = sand.u32 %s226, 1
        %s841 = smul.addr %s840, 16
        %s842 = scalar_lea.vmem [#allocation5], %s841
        // Predicated region
        $region61: #{tpu_custom_call.1} parent=55 // pred_check
          %p843 = pneg %p236
        $region62: #{tpu_custom_call.1} parent=55 // pred_check_branch
          %845 = sbr.rel (%p843) target = $region64
        $region63: #{tpu_custom_call.1} parent=55 // pred_region
          %s847 = ssub.s32 256, 256
          %848 = vsyncadd %s839, %s847
          %s849 = smul.addr %s24, 2
          %s850 = smul.addr %s849, 128
          %s851 = scalar_lea.hbm %s9, %s850
          %s853 = sshll.u32 %s842, 4
          %s854 = int_to_ptr.vmem [resolvable:$true] %s853
          %856 = dma.vmem_to_hbm [thread:$0]  %s854, 256, %s851, %s839
        $region64: #{tpu_custom_call.1} parent=55 // pred_fallthru
          _
      $region56: #{tpu_custom_call.1} parent=5 // pred_fallthru
        _
      %p857 = scmp.le.s32.totalorder 2, %s19
      // Predicated region
      $region65: #{tpu_custom_call.1} parent=5 // pred_check
        %p858 = pneg %p857
      $region66: #{tpu_custom_call.1} parent=5 // pred_check_branch
        %860 = sbr.rel (%p858) target = $region68
      $region67: #{tpu_custom_call.1} parent=5 // pred_region
        %s861 = ssub.s32 %s19, 2
        // Predicated region
        $region69: #{tpu_custom_call.1} parent=67 // pred_check
          %p862 = pneg %p242
        $region70: #{tpu_custom_call.1} parent=67 // pred_check_branch
          %864 = sbr.rel (%p862) target = $region72
        $region71: #{tpu_custom_call.1} parent=67 // pred_region
          %s865 = sand.u32 %s227, 1
          %s866 = scalar_lea.sflag [#allocation4], %s865
          %s867 = sand.u32 %s227, 1
          %s868 = smul.addr %s867, 16
          %s869 = scalar_lea.vmem [#allocation5], %s868
          %870 = dma.done %s866, 256
        $region72: #{tpu_custom_call.1} parent=67 // pred_fallthru
          _
      $region68: #{tpu_custom_call.1} parent=5 // pred_fallthru
        _
    $region6: #{tpu_custom_call.1} parent=1 // loop_footer
      %s23 = sadd.s32 1, %s19
    $region7: #{tpu_custom_call.1} parent=1 // loop_footer_branch
      %18 = sbr.rel target = $region3
    $region8: #{tpu_custom_call.1} parent=1 // loop_exit
      _
    %871 = vsyncpa [#allocation3], 1
    %s872 = scalar_lea.sflag [#allocation3], 1
    %873 = vsyncpa %s872, 1
    %874 = vsyncpa [#allocation4], 1
    %s875 = scalar_lea.sflag [#allocation4], 1
    %876 = vsyncpa %s875, 1

</llo_original>
